<compile_context>
chip_gen: v7x
topology: tpu7x:2x2x1
jax: 0.10.0
libtpu: 0.0.40
codegen_flags: <defaults>
</compile_context>

<pallas_src>
import jax
import jax.numpy as jnp
from jax import lax
from jax.experimental import pallas as pl
from jax.experimental.pallas import tpu as pltpu

LN_EPS = 1e-5        # PyTorch nn.LayerNorm default eps
TILE_B_MAX = 4096    # batch tile (rows); ~1.5 MiB double-buffered at these dims


def _round_up(x, m):
    return ((x + m - 1) // m) * m


def _linear_ln_tanh(x_f32, w_ref, g_ref, b_ref):
    """Linear(no bias, PyTorch (out,in) bf16 weight) -> LayerNorm -> Tanh.

    Matmul operands are bf16 (MXU native), accumulation and LayerNorm are f32.
    """
    # x: [T, Din] f32 -> bf16, w: [Dout, Din] bf16  ->  h: [T, Dout] f32 (MXU)
    h = lax.dot_general(x_f32.astype(jnp.bfloat16), w_ref[...],
                        (((1,), (1,)), ((), ())),
                        preferred_element_type=jnp.float32)
    d = h.shape[-1]
    inv_d = jnp.float32(1.0 / d)
    s1 = jnp.sum(h, axis=-1, keepdims=True)             # XLU reduce
    s2 = jnp.sum(h * h, axis=-1, keepdims=True)          # single fused pass
    mu = s1 * inv_d
    var = jnp.maximum(s2 * inv_d - mu * mu, 0.0)          # clamp: no NaN via rsqrt
    h_norm = (h - mu) * lax.rsqrt(var + LN_EPS)
    return jnp.tanh(h_norm * g_ref[...] + b_ref[...])     # EUP tanh


def generator_kernel(x_ref,
                     w0_ref, g0_ref, b0_ref,
                     w1_ref, g1_ref, b1_ref,
                     w2_ref, g2_ref, b2_ref,
                     o_ref):
    x = x_ref[...].astype(jnp.float32)
    h = _linear_ln_tanh(x, w0_ref, g0_ref, b0_ref) + x
    h = _linear_ln_tanh(h, w1_ref, g1_ref, b1_ref) + h
    o_ref[...] = _linear_ln_tanh(h, w2_ref, g2_ref, b2_ref).astype(o_ref.dtype)


def pack_params(params):
    """One-time prep outside the hot path: weights (PyTorch (out,in) layout)
    cast to bf16 for the MXU; gamma/beta kept f32 and reshaped to [1, D]."""
    return {
        "w0": params["w0"].astype(jnp.bfloat16),
        "g0": params["g0"].reshape(1, -1).astype(jnp.float32),
        "b0": params["b0"].reshape(1, -1).astype(jnp.float32),
        "w1": params["w1"].astype(jnp.bfloat16),
        "g1": params["g1"].reshape(1, -1).astype(jnp.float32),
        "b1": params["b1"].reshape(1, -1).astype(jnp.float32),
        "w2": params["w2"].astype(jnp.bfloat16),
        "g2": params["g2"].reshape(1, -1).astype(jnp.float32),
        "b2": params["b2"].reshape(1, -1).astype(jnp.float32),
        "out_dim": int(params["w2"].shape[0]),   # static
    }


def generator_forward(noise, packed, tile_b_max=TILE_B_MAX):
    """noise: [B, latent_dim] f32. packed: output of pack_params."""
    B, latent = noise.shape
    out_dim = packed["out_dim"]

    # >= 2 grid steps whenever B allows: enables v7x megacore sharding of the
    # batch axis and double-buffered pipelining on all generations.  Tiles are
    # multiples of 8 sublanes, capped to amortize per-step overhead.
    min_splits = 2
    tile_b = min(tile_b_max, max(8, _round_up(pl.cdiv(B, min_splits), 8)))
    grid = (pl.cdiv(B, tile_b),)

    x_spec = pl.BlockSpec((tile_b, latent), lambda i: (i, 0))
    o_spec = pl.BlockSpec((tile_b, out_dim), lambda i: (i, 0))

    def resident(shape):
        # Whole-array block, same index every grid step -> stays in VMEM.
        return pl.BlockSpec(shape, lambda i: (0, 0))

    # Advisory cost hint (tiny, memory/overhead-bound kernel).
    flops = 2 * B * (2 * latent * latent + latent * out_dim)
    transcendentals = B * (2 * latent + out_dim)
    bytes_accessed = (4 * B * (latent + out_dim)
                      + 2 * (2 * latent * latent + out_dim * latent)
                      + 4 * (4 * latent + 2 * out_dim))

    return pl.pallas_call(
        generator_kernel,
        out_shape=jax.ShapeDtypeStruct((B, out_dim), noise.dtype),
        grid=grid,
        in_specs=[
            x_spec,
            resident((latent, latent)), resident((1, latent)), resident((1, latent)),
            resident((latent, latent)), resident((1, latent)), resident((1, latent)),
            resident((out_dim, latent)), resident((1, out_dim)), resident((1, out_dim)),
        ],
        out_specs=o_spec,
        compiler_params=pltpu.CompilerParams(
            dimension_semantics=("parallel",)),
        cost_estimate=pl.CostEstimate(flops=flops,
                                      transcendentals=transcendentals,
                                      bytes_accessed=bytes_accessed),
    )(noise,
      packed["w0"], packed["g0"], packed["b0"],
      packed["w1"], packed["g1"], packed["b1"],
      packed["w2"], packed["g2"], packed["b2"])


def _reference_forward(noise, params):
    """Pure-JAX f32 reference matching the PyTorch module exactly."""
    def blk(x, w, g, b):
        h = x @ w.T
        mu = jnp.mean(h, axis=-1, keepdims=True)
        var = jnp.mean(jnp.square(h - mu), axis=-1, keepdims=True)
        return jnp.tanh(((h - mu) / jnp.sqrt(var + LN_EPS)) * g + b)

    h = blk(noise, params["w0"], params["g0"], params["b0"]) + noise
    h = blk(h, params["w1"], params["g1"], params["b1"]) + h
    return blk(h, params["w2"], params["g2"], params["b2"])


def init_params(key, latent_dim, output_dim):
    ks = jax.random.split(key, 9)
    scale_in = 1.0 / jnp.sqrt(latent_dim)
    return {
        # Linear weights, PyTorch layout (out_features, in_features)
        "w0": jax.random.uniform(ks[0], (latent_dim, latent_dim), jnp.float32,
                                 -scale_in, scale_in),
        "w1": jax.random.uniform(ks[1], (latent_dim, latent_dim), jnp.float32,
                                 -scale_in, scale_in),
        "w2": jax.random.uniform(ks[2], (output_dim, latent_dim), jnp.float32,
                                 -scale_in, scale_in),
        # LayerNorm affine params (gamma/beta); randomized deterministically
        "g0": 1.0 + 0.1 * jax.random.normal(ks[3], (latent_dim,), jnp.float32),
        "b0": 0.1 * jax.random.normal(ks[4], (latent_dim,), jnp.float32),
        "g1": 1.0 + 0.1 * jax.random.normal(ks[5], (latent_dim,), jnp.float32),
        "b1": 0.1 * jax.random.normal(ks[6], (latent_dim,), jnp.float32),
        "g2": 1.0 + 0.1 * jax.random.normal(ks[7], (output_dim,), jnp.float32),
        "b2": 0.1 * jax.random.normal(ks[8], (output_dim,), jnp.float32),
    }


if __name__ == "__main__":
    key = jax.random.PRNGKey(0)
    k_noise, k_params = jax.random.split(key)

    batch = 64          # small, but exercises a 2-step grid (tile_b = 32)
    latent_dim = 32
    output_dim = 16

    noise = jax.random.normal(k_noise, (batch, latent_dim), jnp.float32)
    params = init_params(k_params, latent_dim, output_dim)
    packed = pack_params(params)   # one-time weight prep (bf16 cast, no transposes)

    out = generator_forward(noise, packed)
    out = jax.block_until_ready(out)

    ref = _reference_forward(noise, params)
    assert out.shape == (batch, output_dim)
    # bf16 matmul operands (f32 accumulate / f32 LN) -> loosened tolerance.
    assert jnp.allclose(out, ref, atol=5e-2, rtol=0.0), "mismatch vs reference"

    print("KERNEL_OK")
</pallas_src>

<mosaic_0001>
module attributes {stable_mosaic.version = 11 : i64} {
  func.func @generator_kernel(%arg0: i32, %arg1: memref<32x32xf32, #tpu.memory_space<vmem>>, %arg2: memref<32x32xbf16, #tpu.memory_space<vmem>>, %arg3: memref<1x32xf32, #tpu.memory_space<vmem>>, %arg4: memref<1x32xf32, #tpu.memory_space<vmem>>, %arg5: memref<32x32xbf16, #tpu.memory_space<vmem>>, %arg6: memref<1x32xf32, #tpu.memory_space<vmem>>, %arg7: memref<1x32xf32, #tpu.memory_space<vmem>>, %arg8: memref<16x32xbf16, #tpu.memory_space<vmem>>, %arg9: memref<1x16xf32, #tpu.memory_space<vmem>>, %arg10: memref<1x16xf32, #tpu.memory_space<vmem>>, %arg11: memref<32x16xf32, #tpu.memory_space<vmem>>) attributes {dimension_semantics = [#tpu.dimension_semantics<parallel>], iteration_bounds = array<i64: 2>, scalar_prefetch = 0 : i64, scratch_operands = 0 : i64, tpu.core_type = #tpu.core_type<tc>, window_params = [{transform_indices = @transform_0, window_bounds = array<i64: 32, 32>}, {pipeline_mode = #tpu.pipeline_mode<synchronous>, transform_indices = @transform_1, window_bounds = array<i64: 32, 32>}, {pipeline_mode = #tpu.pipeline_mode<synchronous>, transform_indices = @transform_2, window_bounds = array<i64: 1, 32>}, {pipeline_mode = #tpu.pipeline_mode<synchronous>, transform_indices = @transform_3, window_bounds = array<i64: 1, 32>}, {pipeline_mode = #tpu.pipeline_mode<synchronous>, transform_indices = @transform_4, window_bounds = array<i64: 32, 32>}, {pipeline_mode = #tpu.pipeline_mode<synchronous>, transform_indices = @transform_5, window_bounds = array<i64: 1, 32>}, {pipeline_mode = #tpu.pipeline_mode<synchronous>, transform_indices = @transform_6, window_bounds = array<i64: 1, 32>}, {pipeline_mode = #tpu.pipeline_mode<synchronous>, transform_indices = @transform_7, window_bounds = array<i64: 16, 32>}, {pipeline_mode = #tpu.pipeline_mode<synchronous>, transform_indices = @transform_8, window_bounds = array<i64: 1, 16>}, {pipeline_mode = #tpu.pipeline_mode<synchronous>, transform_indices = @transform_9, window_bounds = array<i64: 1, 16>}, {transform_indices = @transform_10, window_bounds = array<i64: 32, 16>}]} {
    %c0 = arith.constant 0 : index
    %c0_0 = arith.constant 0 : index
    %0 = vector.load %arg1[%c0, %c0_0] : memref<32x32xf32, #tpu.memory_space<vmem>>, vector<32x32xf32>
    %1 = arith.truncf %0 : vector<32x32xf32> to vector<32x32xbf16>
    %c0_1 = arith.constant 0 : index
    %c0_2 = arith.constant 0 : index
    %2 = vector.load %arg2[%c0_1, %c0_2] : memref<32x32xbf16, #tpu.memory_space<vmem>>, vector<32x32xbf16>
    %cst = arith.constant dense<0.000000e+00> : vector<32x32xf32>
    %3 = tpu.matmul %1, %2, %cst {dimension_numbers = #tpu.dot_dimension_numbers<[1], [1], [0], [0], [0, 0, 1, 0], [], []>} : vector<32x32xbf16>, vector<32x32xbf16>, vector<32x32xf32> -> vector<32x32xf32>
    %cst_3 = arith.constant dense<0.000000e+00> : vector<32xf32>
    %4 = vector.multi_reduction <add>, %3, %cst_3 [1] : vector<32x32xf32> to vector<32xf32>
    %5 = vector.shape_cast %4 : vector<32xf32> to vector<32x1xf32>
    %6 = arith.mulf %3, %3 : vector<32x32xf32>
    %cst_4 = arith.constant dense<0.000000e+00> : vector<32xf32>
    %7 = vector.multi_reduction <add>, %6, %cst_4 [1] : vector<32x32xf32> to vector<32xf32>
    %8 = vector.shape_cast %7 : vector<32xf32> to vector<32x1xf32>
    %cst_5 = arith.constant 3.125000e-02 : f32
    %9 = vector.broadcast %cst_5 : f32 to vector<32x1xf32>
    %10 = arith.mulf %5, %9 : vector<32x1xf32>
    %cst_6 = arith.constant 3.125000e-02 : f32
    %11 = vector.broadcast %cst_6 : f32 to vector<32x1xf32>
    %12 = arith.mulf %8, %11 : vector<32x1xf32>
    %13 = arith.mulf %10, %10 : vector<32x1xf32>
    %14 = arith.subf %12, %13 : vector<32x1xf32>
    %cst_7 = arith.constant 0.000000e+00 : f32
    %15 = vector.broadcast %cst_7 : f32 to vector<32x1xf32>
    %16 = arith.maximumf %14, %15 : vector<32x1xf32>
    %17 = vector.broadcast %10 : vector<32x1xf32> to vector<32x32xf32>
    %18 = arith.subf %3, %17 : vector<32x32xf32>
    %cst_8 = arith.constant 9.99999974E-6 : f32
    %19 = vector.broadcast %cst_8 : f32 to vector<32x1xf32>
    %20 = arith.addf %16, %19 : vector<32x1xf32>
    %21 = math.rsqrt %20 : vector<32x1xf32>
    %22 = vector.broadcast %21 : vector<32x1xf32> to vector<32x32xf32>
    %23 = arith.mulf %18, %22 : vector<32x32xf32>
    %c0_9 = arith.constant 0 : index
    %c0_10 = arith.constant 0 : index
    %24 = vector.load %arg3[%c0_9, %c0_10] : memref<1x32xf32, #tpu.memory_space<vmem>>, vector<1x32xf32>
    %25 = vector.broadcast %24 : vector<1x32xf32> to vector<32x32xf32>
    %26 = arith.mulf %23, %25 : vector<32x32xf32>
    %c0_11 = arith.constant 0 : index
    %c0_12 = arith.constant 0 : index
    %27 = vector.load %arg4[%c0_11, %c0_12] : memref<1x32xf32, #tpu.memory_space<vmem>>, vector<1x32xf32>
    %28 = vector.broadcast %27 : vector<1x32xf32> to vector<32x32xf32>
    %29 = arith.addf %26, %28 : vector<32x32xf32>
    %30 = math.tanh %29 : vector<32x32xf32>
    %31 = arith.addf %30, %0 : vector<32x32xf32>
    %32 = arith.truncf %31 : vector<32x32xf32> to vector<32x32xbf16>
    %c0_13 = arith.constant 0 : index
    %c0_14 = arith.constant 0 : index
    %33 = vector.load %arg5[%c0_13, %c0_14] : memref<32x32xbf16, #tpu.memory_space<vmem>>, vector<32x32xbf16>
    %cst_15 = arith.constant dense<0.000000e+00> : vector<32x32xf32>
    %34 = tpu.matmul %32, %33, %cst_15 {dimension_numbers = #tpu.dot_dimension_numbers<[1], [1], [0], [0], [0, 0, 1, 0], [], []>} : vector<32x32xbf16>, vector<32x32xbf16>, vector<32x32xf32> -> vector<32x32xf32>
    %cst_16 = arith.constant dense<0.000000e+00> : vector<32xf32>
    %35 = vector.multi_reduction <add>, %34, %cst_16 [1] : vector<32x32xf32> to vector<32xf32>
    %36 = vector.shape_cast %35 : vector<32xf32> to vector<32x1xf32>
    %37 = arith.mulf %34, %34 : vector<32x32xf32>
    %cst_17 = arith.constant dense<0.000000e+00> : vector<32xf32>
    %38 = vector.multi_reduction <add>, %37, %cst_17 [1] : vector<32x32xf32> to vector<32xf32>
    %39 = vector.shape_cast %38 : vector<32xf32> to vector<32x1xf32>
    %cst_18 = arith.constant 3.125000e-02 : f32
    %40 = vector.broadcast %cst_18 : f32 to vector<32x1xf32>
    %41 = arith.mulf %36, %40 : vector<32x1xf32>
    %cst_19 = arith.constant 3.125000e-02 : f32
    %42 = vector.broadcast %cst_19 : f32 to vector<32x1xf32>
    %43 = arith.mulf %39, %42 : vector<32x1xf32>
    %44 = arith.mulf %41, %41 : vector<32x1xf32>
    %45 = arith.subf %43, %44 : vector<32x1xf32>
    %cst_20 = arith.constant 0.000000e+00 : f32
    %46 = vector.broadcast %cst_20 : f32 to vector<32x1xf32>
    %47 = arith.maximumf %45, %46 : vector<32x1xf32>
    %48 = vector.broadcast %41 : vector<32x1xf32> to vector<32x32xf32>
    %49 = arith.subf %34, %48 : vector<32x32xf32>
    %cst_21 = arith.constant 9.99999974E-6 : f32
    %50 = vector.broadcast %cst_21 : f32 to vector<32x1xf32>
    %51 = arith.addf %47, %50 : vector<32x1xf32>
    %52 = math.rsqrt %51 : vector<32x1xf32>
    %53 = vector.broadcast %52 : vector<32x1xf32> to vector<32x32xf32>
    %54 = arith.mulf %49, %53 : vector<32x32xf32>
    %c0_22 = arith.constant 0 : index
    %c0_23 = arith.constant 0 : index
    %55 = vector.load %arg6[%c0_22, %c0_23] : memref<1x32xf32, #tpu.memory_space<vmem>>, vector<1x32xf32>
    %56 = vector.broadcast %55 : vector<1x32xf32> to vector<32x32xf32>
    %57 = arith.mulf %54, %56 : vector<32x32xf32>
    %c0_24 = arith.constant 0 : index
    %c0_25 = arith.constant 0 : index
    %58 = vector.load %arg7[%c0_24, %c0_25] : memref<1x32xf32, #tpu.memory_space<vmem>>, vector<1x32xf32>
    %59 = vector.broadcast %58 : vector<1x32xf32> to vector<32x32xf32>
    %60 = arith.addf %57, %59 : vector<32x32xf32>
    %61 = math.tanh %60 : vector<32x32xf32>
    %62 = arith.addf %61, %31 : vector<32x32xf32>
    %63 = arith.truncf %62 : vector<32x32xf32> to vector<32x32xbf16>
    %c0_26 = arith.constant 0 : index
    %c0_27 = arith.constant 0 : index
    %64 = vector.load %arg8[%c0_26, %c0_27] : memref<16x32xbf16, #tpu.memory_space<vmem>>, vector<16x32xbf16>
    %cst_28 = arith.constant dense<0.000000e+00> : vector<32x16xf32>
    %65 = tpu.matmul %63, %64, %cst_28 {dimension_numbers = #tpu.dot_dimension_numbers<[1], [1], [0], [0], [0, 0, 1, 0], [], []>} : vector<32x32xbf16>, vector<16x32xbf16>, vector<32x16xf32> -> vector<32x16xf32>
    %cst_29 = arith.constant dense<0.000000e+00> : vector<32xf32>
    %66 = vector.multi_reduction <add>, %65, %cst_29 [1] : vector<32x16xf32> to vector<32xf32>
    %67 = vector.shape_cast %66 : vector<32xf32> to vector<32x1xf32>
    %68 = arith.mulf %65, %65 : vector<32x16xf32>
    %cst_30 = arith.constant dense<0.000000e+00> : vector<32xf32>
    %69 = vector.multi_reduction <add>, %68, %cst_30 [1] : vector<32x16xf32> to vector<32xf32>
    %70 = vector.shape_cast %69 : vector<32xf32> to vector<32x1xf32>
    %cst_31 = arith.constant 6.250000e-02 : f32
    %71 = vector.broadcast %cst_31 : f32 to vector<32x1xf32>
    %72 = arith.mulf %67, %71 : vector<32x1xf32>
    %cst_32 = arith.constant 6.250000e-02 : f32
    %73 = vector.broadcast %cst_32 : f32 to vector<32x1xf32>
    %74 = arith.mulf %70, %73 : vector<32x1xf32>
    %75 = arith.mulf %72, %72 : vector<32x1xf32>
    %76 = arith.subf %74, %75 : vector<32x1xf32>
    %cst_33 = arith.constant 0.000000e+00 : f32
    %77 = vector.broadcast %cst_33 : f32 to vector<32x1xf32>
    %78 = arith.maximumf %76, %77 : vector<32x1xf32>
    %79 = vector.broadcast %72 : vector<32x1xf32> to vector<32x16xf32>
    %80 = arith.subf %65, %79 : vector<32x16xf32>
    %cst_34 = arith.constant 9.99999974E-6 : f32
    %81 = vector.broadcast %cst_34 : f32 to vector<32x1xf32>
    %82 = arith.addf %78, %81 : vector<32x1xf32>
    %83 = math.rsqrt %82 : vector<32x1xf32>
    %84 = vector.broadcast %83 : vector<32x1xf32> to vector<32x16xf32>
    %85 = arith.mulf %80, %84 : vector<32x16xf32>
    %c0_35 = arith.constant 0 : index
    %c0_36 = arith.constant 0 : index
    %86 = vector.load %arg9[%c0_35, %c0_36] : memref<1x16xf32, #tpu.memory_space<vmem>>, vector<1x16xf32>
    %87 = vector.broadcast %86 : vector<1x16xf32> to vector<32x16xf32>
    %88 = arith.mulf %85, %87 : vector<32x16xf32>
    %c0_37 = arith.constant 0 : index
    %c0_38 = arith.constant 0 : index
    %89 = vector.load %arg10[%c0_37, %c0_38] : memref<1x16xf32, #tpu.memory_space<vmem>>, vector<1x16xf32>
    %90 = vector.broadcast %89 : vector<1x16xf32> to vector<32x16xf32>
    %91 = arith.addf %88, %90 : vector<32x16xf32>
    %92 = math.tanh %91 : vector<32x16xf32>
    %c0_39 = arith.constant 0 : index
    %c0_40 = arith.constant 0 : index
    %93 = vector.load %arg11[%c0_39, %c0_40] : memref<32x16xf32, #tpu.memory_space<vmem>>, vector<32x16xf32>
    tpu.vector_store %arg11[%c0_39, %c0_40], %92 {strides = array<i32>} : memref<32x16xf32, #tpu.memory_space<vmem>>, vector<32x16xf32>,
    return
  }
  func.func @transform_0(%arg0: i32) -> (i32, i32) {
    %c0_i32 = arith.constant 0 : i32
    %c0_i32_0 = arith.constant 0 : i32
    return %arg0, %c0_i32 : i32, i32
  }
  func.func @transform_1(%arg0: i32) -> (i32, i32) {
    %c0_i32 = arith.constant 0 : i32
    %c0_i32_0 = arith.constant 0 : i32
    %c0_i32_1 = arith.constant 0 : i32
    return %c0_i32, %c0_i32_0 : i32, i32
  }
  func.func @transform_2(%arg0: i32) -> (i32, i32) {
    %c0_i32 = arith.constant 0 : i32
    %c0_i32_0 = arith.constant 0 : i32
    %c0_i32_1 = arith.constant 0 : i32
    return %c0_i32, %c0_i32_0 : i32, i32
  }
  func.func @transform_3(%arg0: i32) -> (i32, i32) {
    %c0_i32 = arith.constant 0 : i32
    %c0_i32_0 = arith.constant 0 : i32
    %c0_i32_1 = arith.constant 0 : i32
    return %c0_i32, %c0_i32_0 : i32, i32
  }
  func.func @transform_4(%arg0: i32) -> (i32, i32) {
    %c0_i32 = arith.constant 0 : i32
    %c0_i32_0 = arith.constant 0 : i32
    %c0_i32_1 = arith.constant 0 : i32
    return %c0_i32, %c0_i32_0 : i32, i32
  }
  func.func @transform_5(%arg0: i32) -> (i32, i32) {
    %c0_i32 = arith.constant 0 : i32
    %c0_i32_0 = arith.constant 0 : i32
    %c0_i32_1 = arith.constant 0 : i32
    return %c0_i32, %c0_i32_0 : i32, i32
  }
  func.func @transform_6(%arg0: i32) -> (i32, i32) {
    %c0_i32 = arith.constant 0 : i32
    %c0_i32_0 = arith.constant 0 : i32
    %c0_i32_1 = arith.constant 0 : i32
    return %c0_i32, %c0_i32_0 : i32, i32
  }
  func.func @transform_7(%arg0: i32) -> (i32, i32) {
    %c0_i32 = arith.constant 0 : i32
    %c0_i32_0 = arith.constant 0 : i32
    %c0_i32_1 = arith.constant 0 : i32
    return %c0_i32, %c0_i32_0 : i32, i32
  }
  func.func @transform_8(%arg0: i32) -> (i32, i32) {
    %c0_i32 = arith.constant 0 : i32
    %c0_i32_0 = arith.constant 0 : i32
    %c0_i32_1 = arith.constant 0 : i32
    return %c0_i32, %c0_i32_0 : i32, i32
  }
  func.func @transform_9(%arg0: i32) -> (i32, i32) {
    %c0_i32 = arith.constant 0 : i32
    %c0_i32_0 = arith.constant 0 : i32
    %c0_i32_1 = arith.constant 0 : i32
    return %c0_i32, %c0_i32_0 : i32, i32
  }
  func.func @transform_10(%arg0: i32) -> (i32, i32) {
    %c0_i32 = arith.constant 0 : i32
    %c0_i32_0 = arith.constant 0 : i32
    return %arg0, %c0_i32 : i32, i32
  }
}

</mosaic_0001>

<llo_original>
// kernel: tpu_custom_call.1
$region0: #{tpu_custom_call.1}
  #allocation0 [shape = 'u32[]', space=smem, size = 0x4, offset = 0x4, fixed_abs, tag = 'smem constant byte address 0x4 - core index']
  #allocation1 [shape = 'u32[144,128]{1,0:T(1,128)}', space=vmem, size = 0x12000, scoped, tag = 'internal scratch']
  %s0 = inlined_call_operand.vmem [shape: f32[64,32], index: 0, kind: input, shape index: {}]
  %s1 = inlined_call_operand.vmem [shape: bf16[32,32], index: 1, kind: input, shape index: {}]
  %s2 = inlined_call_operand.vmem [shape: f32[1,32], index: 2, kind: input, shape index: {}]
  %s3 = inlined_call_operand.vmem [shape: f32[1,32], index: 3, kind: input, shape index: {}]
  %s4 = inlined_call_operand.vmem [shape: bf16[32,32], index: 4, kind: input, shape index: {}]
  %s5 = inlined_call_operand.vmem [shape: f32[1,32], index: 5, kind: input, shape index: {}]
  %s6 = inlined_call_operand.vmem [shape: f32[1,32], index: 6, kind: input, shape index: {}]
  %s7 = inlined_call_operand.vmem [shape: bf16[16,32], index: 7, kind: input, shape index: {}]
  %s8 = inlined_call_operand.vmem [shape: f32[1,16], index: 8, kind: input, shape index: {}]
  %s9 = inlined_call_operand.vmem [shape: f32[1,16], index: 9, kind: input, shape index: {}]
  %s10 = inlined_call_operand.vmem [shape: f32[64,16], index: 10, kind: output, shape index: {}]
  %s11 = sld [smem:[#allocation0]]
  $region73: #{tpu_custom_call.1} parent=0
    _
  %s13 = ssub.s32 1, %s11
  %s14 = scalar_select 0, %s13, %s11
  loop: start=0, step=1, limit=4
  $region2: #{tpu_custom_call.1} parent=0 // loop_pre_header
    _
  $region3: #{tpu_custom_call.1} parent=0 // loop_header
    %s16 = sphi 0, %s20
    %p17 = scmp.ge.s32.totalorder %s16, 4
    %s26 = sphi 0, %s28
    %s29 = sphi 0, %s26
    %s30 = sphi 0, %s29
    %s46 = sphi 0, %s30
    %s50 = sphi 0, %s50
    %s52 = sphi 0, %s50
    %s53 = sphi 0, %s52
    %s67 = sphi 0, %s53
    %s71 = sphi 0, %s71
    %s73 = sphi 0, %s71
    %s74 = sphi 0, %s73
    %s88 = sphi 0, %s74
    %s92 = sphi 0, %s92
    %s94 = sphi 0, %s92
    %s95 = sphi 0, %s94
    %s109 = sphi 0, %s95
    %s113 = sphi 0, %s113
    %s115 = sphi 0, %s113
    %s116 = sphi 0, %s115
    %s130 = sphi 0, %s116
    %s134 = sphi 0, %s134
    %s136 = sphi 0, %s134
    %s137 = sphi 0, %s136
    %s151 = sphi 0, %s137
    %s155 = sphi 0, %s155
    %s157 = sphi 0, %s155
    %s158 = sphi 0, %s157
    %s172 = sphi 0, %s158
    %s176 = sphi 0, %s176
    %s178 = sphi 0, %s176
    %s179 = sphi 0, %s178
    %s193 = sphi 0, %s179
    %s197 = sphi 0, %s197
    %s199 = sphi 0, %s197
    %s200 = sphi 0, %s199
    %s214 = sphi 0, %s200
    %s218 = sphi 0, %s218
    %s220 = sphi 0, %s218
    %s221 = sphi 0, %s220
    %s235 = sphi 0, %s221
    %s241 = sphi 0, %s243
    %s244 = sphi 0, %s241
    %s245 = sphi 0, %s244
    %s261 = sphi 0, %s245
  $region4: #{tpu_custom_call.1} parent=0 // loop_header_branch
    %19 = sbr.rel (%p17) target = $region8
  $region5: #{tpu_custom_call.1} parent=0 // loop_body
    %s21 = ssub.s32 %s16, 1
    %s22 = ssub.s32 %s16, 2
    %s23 = sadd.s32 %s16, 1
    %s24 = ssub.s32 %s16, %s23
    %p25 = scmp.eq.s32.totalorder %s24, 0
    %s27 = sadd.s32 %s26, 1
    %s28 = scalar_select %p25, %s26, %s27
    %p31 = pneg %p25
    %p32 = scmp.eq.s32.totalorder %s16, 1
    %p33 = por %p31, %p32
    %p34 = scmp.ne.s32.totalorder %s26, %s29
    %p35 = scmp.eq.s32.totalorder %s16, 0
    %p36 = por %p34, %p35
    %p37 = scmp.ne.s32.totalorder %s26, %s29
    %p38 = scmp.eq.s32.totalorder %s21, 1
    %p39 = por %p37, %p38
    %p40 = scmp.ne.s32.totalorder %s29, %s30
    %p41 = scmp.eq.s32.totalorder %s21, 0
    %p42 = por %p40, %p41
    %p43 = scmp.ne.s32.totalorder %s29, %s30
    %p44 = scmp.eq.s32.totalorder %s22, 1
    %p45 = por %p43, %p44
    %p47 = scmp.ne.s32.totalorder %s30, %s46
    %p48 = scmp.eq.s32.totalorder %s22, 0
    %p49 = por %p47, %p48
    %s51 = sadd.s32 %s50, 1
    %p54 = scmp.eq.s32.totalorder %s16, 1
    %p55 = scmp.ne.s32.totalorder %s50, %s52
    %p56 = scmp.eq.s32.totalorder %s16, 0
    %p57 = por %p55, %p56
    %p58 = scmp.ne.s32.totalorder %s50, %s52
    %p59 = scmp.eq.s32.totalorder %s21, 1
    %p60 = por %p58, %p59
    %p61 = scmp.ne.s32.totalorder %s52, %s53
    %p62 = scmp.eq.s32.totalorder %s21, 0
    %p63 = por %p61, %p62
    %p64 = scmp.ne.s32.totalorder %s52, %s53
    %p65 = scmp.eq.s32.totalorder %s22, 1
    %p66 = por %p64, %p65
    %p68 = scmp.ne.s32.totalorder %s53, %s67
    %p69 = scmp.eq.s32.totalorder %s22, 0
    %p70 = por %p68, %p69
    %s72 = sadd.s32 %s71, 1
    %p75 = scmp.eq.s32.totalorder %s16, 1
    %p76 = scmp.ne.s32.totalorder %s71, %s73
    %p77 = scmp.eq.s32.totalorder %s16, 0
    %p78 = por %p76, %p77
    %p79 = scmp.ne.s32.totalorder %s71, %s73
    %p80 = scmp.eq.s32.totalorder %s21, 1
    %p81 = por %p79, %p80
    %p82 = scmp.ne.s32.totalorder %s73, %s74
    %p83 = scmp.eq.s32.totalorder %s21, 0
    %p84 = por %p82, %p83
    %p85 = scmp.ne.s32.totalorder %s73, %s74
    %p86 = scmp.eq.s32.totalorder %s22, 1
    %p87 = por %p85, %p86
    %p89 = scmp.ne.s32.totalorder %s74, %s88
    %p90 = scmp.eq.s32.totalorder %s22, 0
    %p91 = por %p89, %p90
    %s93 = sadd.s32 %s92, 1
    %p96 = scmp.eq.s32.totalorder %s16, 1
    %p97 = scmp.ne.s32.totalorder %s92, %s94
    %p98 = scmp.eq.s32.totalorder %s16, 0
    %p99 = por %p97, %p98
    %p100 = scmp.ne.s32.totalorder %s92, %s94
    %p101 = scmp.eq.s32.totalorder %s21, 1
    %p102 = por %p100, %p101
    %p103 = scmp.ne.s32.totalorder %s94, %s95
    %p104 = scmp.eq.s32.totalorder %s21, 0
    %p105 = por %p103, %p104
    %p106 = scmp.ne.s32.totalorder %s94, %s95
    %p107 = scmp.eq.s32.totalorder %s22, 1
    %p108 = por %p106, %p107
    %p110 = scmp.ne.s32.totalorder %s95, %s109
    %p111 = scmp.eq.s32.totalorder %s22, 0
    %p112 = por %p110, %p111
    %s114 = sadd.s32 %s113, 1
    %p117 = scmp.eq.s32.totalorder %s16, 1
    %p118 = scmp.ne.s32.totalorder %s113, %s115
    %p119 = scmp.eq.s32.totalorder %s16, 0
    %p120 = por %p118, %p119
    %p121 = scmp.ne.s32.totalorder %s113, %s115
    %p122 = scmp.eq.s32.totalorder %s21, 1
    %p123 = por %p121, %p122
    %p124 = scmp.ne.s32.totalorder %s115, %s116
    %p125 = scmp.eq.s32.totalorder %s21, 0
    %p126 = por %p124, %p125
    %p127 = scmp.ne.s32.totalorder %s115, %s116
    %p128 = scmp.eq.s32.totalorder %s22, 1
    %p129 = por %p127, %p128
    %p131 = scmp.ne.s32.totalorder %s116, %s130
    %p132 = scmp.eq.s32.totalorder %s22, 0
    %p133 = por %p131, %p132
    %s135 = sadd.s32 %s134, 1
    %p138 = scmp.eq.s32.totalorder %s16, 1
    %p139 = scmp.ne.s32.totalorder %s134, %s136
    %p140 = scmp.eq.s32.totalorder %s16, 0
    %p141 = por %p139, %p140
    %p142 = scmp.ne.s32.totalorder %s134, %s136
    %p143 = scmp.eq.s32.totalorder %s21, 1
    %p144 = por %p142, %p143
    %p145 = scmp.ne.s32.totalorder %s136, %s137
    %p146 = scmp.eq.s32.totalorder %s21, 0
    %p147 = por %p145, %p146
    %p148 = scmp.ne.s32.totalorder %s136, %s137
    %p149 = scmp.eq.s32.totalorder %s22, 1
    %p150 = por %p148, %p149
    %p152 = scmp.ne.s32.totalorder %s137, %s151
    %p153 = scmp.eq.s32.totalorder %s22, 0
    %p154 = por %p152, %p153
    %s156 = sadd.s32 %s155, 1
    %p159 = scmp.eq.s32.totalorder %s16, 1
    %p160 = scmp.ne.s32.totalorder %s155, %s157
    %p161 = scmp.eq.s32.totalorder %s16, 0
    %p162 = por %p160, %p161
    %p163 = scmp.ne.s32.totalorder %s155, %s157
    %p164 = scmp.eq.s32.totalorder %s21, 1
    %p165 = por %p163, %p164
    %p166 = scmp.ne.s32.totalorder %s157, %s158
    %p167 = scmp.eq.s32.totalorder %s21, 0
    %p168 = por %p166, %p167
    %p169 = scmp.ne.s32.totalorder %s157, %s158
    %p170 = scmp.eq.s32.totalorder %s22, 1
    %p171 = por %p169, %p170
    %p173 = scmp.ne.s32.totalorder %s158, %s172
    %p174 = scmp.eq.s32.totalorder %s22, 0
    %p175 = por %p173, %p174
    %s177 = sadd.s32 %s176, 1
    %p180 = scmp.eq.s32.totalorder %s16, 1
    %p181 = scmp.ne.s32.totalorder %s176, %s178
    %p182 = scmp.eq.s32.totalorder %s16, 0
    %p183 = por %p181, %p182
    %p184 = scmp.ne.s32.totalorder %s176, %s178
    %p185 = scmp.eq.s32.totalorder %s21, 1
    %p186 = por %p184, %p185
    %p187 = scmp.ne.s32.totalorder %s178, %s179
    %p188 = scmp.eq.s32.totalorder %s21, 0
    %p189 = por %p187, %p188
    %p190 = scmp.ne.s32.totalorder %s178, %s179
    %p191 = scmp.eq.s32.totalorder %s22, 1
    %p192 = por %p190, %p191
    %p194 = scmp.ne.s32.totalorder %s179, %s193
    %p195 = scmp.eq.s32.totalorder %s22, 0
    %p196 = por %p194, %p195
    %s198 = sadd.s32 %s197, 1
    %p201 = scmp.eq.s32.totalorder %s16, 1
    %p202 = scmp.ne.s32.totalorder %s197, %s199
    %p203 = scmp.eq.s32.totalorder %s16, 0
    %p204 = por %p202, %p203
    %p205 = scmp.ne.s32.totalorder %s197, %s199
    %p206 = scmp.eq.s32.totalorder %s21, 1
    %p207 = por %p205, %p206
    %p208 = scmp.ne.s32.totalorder %s199, %s200
    %p209 = scmp.eq.s32.totalorder %s21, 0
    %p210 = por %p208, %p209
    %p211 = scmp.ne.s32.totalorder %s199, %s200
    %p212 = scmp.eq.s32.totalorder %s22, 1
    %p213 = por %p211, %p212
    %p215 = scmp.ne.s32.totalorder %s200, %s214
    %p216 = scmp.eq.s32.totalorder %s22, 0
    %p217 = por %p215, %p216
    %s219 = sadd.s32 %s218, 1
    %p222 = scmp.eq.s32.totalorder %s16, 1
    %p223 = scmp.ne.s32.totalorder %s218, %s220
    %p224 = scmp.eq.s32.totalorder %s16, 0
    %p225 = por %p223, %p224
    %p226 = scmp.ne.s32.totalorder %s218, %s220
    %p227 = scmp.eq.s32.totalorder %s21, 1
    %p228 = por %p226, %p227
    %p229 = scmp.ne.s32.totalorder %s220, %s221
    %p230 = scmp.eq.s32.totalorder %s21, 0
    %p231 = por %p229, %p230
    %p232 = scmp.ne.s32.totalorder %s220, %s221
    %p233 = scmp.eq.s32.totalorder %s22, 1
    %p234 = por %p232, %p233
    %p236 = scmp.ne.s32.totalorder %s221, %s235
    %p237 = scmp.eq.s32.totalorder %s22, 0
    %p238 = por %p236, %p237
    %s239 = ssub.s32 %s16, %s23
    %p240 = scmp.eq.s32.totalorder %s239, 0
    %s242 = sadd.s32 %s241, 1
    %s243 = scalar_select %p240, %s241, %s242
    %p246 = pneg %p240
    %p247 = scmp.eq.s32.totalorder %s16, 1
    %p248 = por %p246, %p247
    %p249 = scmp.ne.s32.totalorder %s241, %s244
    %p250 = scmp.eq.s32.totalorder %s16, 0
    %p251 = por %p249, %p250
    %p252 = scmp.ne.s32.totalorder %s241, %s244
    %p253 = scmp.eq.s32.totalorder %s21, 1
    %p254 = por %p252, %p253
    %p255 = scmp.ne.s32.totalorder %s244, %s245
    %p256 = scmp.eq.s32.totalorder %s21, 0
    %p257 = por %p255, %p256
    %p258 = scmp.ne.s32.totalorder %s244, %s245
    %p259 = scmp.eq.s32.totalorder %s22, 1
    %p260 = por %p258, %p259
    %p262 = scmp.ne.s32.totalorder %s245, %s261
    %p263 = scmp.eq.s32.totalorder %s22, 0
    %p264 = por %p262, %p263
    %p265 = scmp.le.s32.totalorder 1, %s16
    %p266 = scmp.lt.s32.totalorder %s16, 3
    %p267 = pnand %p265, %p266
    %p268 = pneg %p267
    // Predicated region
    $region9: #{tpu_custom_call.1} parent=5 // pred_check
      _
    $region10: #{tpu_custom_call.1} parent=5 // pred_check_branch
      %270 = sbr.rel (%p267) target = $region12
    $region11: #{tpu_custom_call.1} parent=5 // pred_region
      %s271 = ssub.s32 %s16, 1
      // Predicated region
      $region13: #{tpu_custom_call.1} parent=11 // pred_check
        %p272 = pneg %p63
      $region14: #{tpu_custom_call.1} parent=11 // pred_check_branch
        %274 = sbr.rel (%p272) target = $region16
      $region15: #{tpu_custom_call.1} parent=11 // pred_region
        _
      $region16: #{tpu_custom_call.1} parent=11 // pred_fallthru
        _
      // Predicated region
      $region17: #{tpu_custom_call.1} parent=11 // pred_check
        %p275 = pneg %p84
      $region18: #{tpu_custom_call.1} parent=11 // pred_check_branch
        %277 = sbr.rel (%p275) target = $region20
      $region19: #{tpu_custom_call.1} parent=11 // pred_region
        _
      $region20: #{tpu_custom_call.1} parent=11 // pred_fallthru
        _
      // Predicated region
      $region21: #{tpu_custom_call.1} parent=11 // pred_check
        %p278 = pneg %p105
      $region22: #{tpu_custom_call.1} parent=11 // pred_check_branch
        %280 = sbr.rel (%p278) target = $region24
      $region23: #{tpu_custom_call.1} parent=11 // pred_region
        _
      $region24: #{tpu_custom_call.1} parent=11 // pred_fallthru
        _
      // Predicated region
      $region25: #{tpu_custom_call.1} parent=11 // pred_check
        %p281 = pneg %p126
      $region26: #{tpu_custom_call.1} parent=11 // pred_check_branch
        %283 = sbr.rel (%p281) target = $region28
      $region27: #{tpu_custom_call.1} parent=11 // pred_region
        _
      $region28: #{tpu_custom_call.1} parent=11 // pred_fallthru
        _
      // Predicated region
      $region29: #{tpu_custom_call.1} parent=11 // pred_check
        %p284 = pneg %p147
      $region30: #{tpu_custom_call.1} parent=11 // pred_check_branch
        %286 = sbr.rel (%p284) target = $region32
      $region31: #{tpu_custom_call.1} parent=11 // pred_region
        _
      $region32: #{tpu_custom_call.1} parent=11 // pred_fallthru
        _
      // Predicated region
      $region33: #{tpu_custom_call.1} parent=11 // pred_check
        %p287 = pneg %p168
      $region34: #{tpu_custom_call.1} parent=11 // pred_check_branch
        %289 = sbr.rel (%p287) target = $region36
      $region35: #{tpu_custom_call.1} parent=11 // pred_region
        _
      $region36: #{tpu_custom_call.1} parent=11 // pred_fallthru
        _
      // Predicated region
      $region37: #{tpu_custom_call.1} parent=11 // pred_check
        %p290 = pneg %p189
      $region38: #{tpu_custom_call.1} parent=11 // pred_check_branch
        %292 = sbr.rel (%p290) target = $region40
      $region39: #{tpu_custom_call.1} parent=11 // pred_region
        _
      $region40: #{tpu_custom_call.1} parent=11 // pred_fallthru
        _
      // Predicated region
      $region41: #{tpu_custom_call.1} parent=11 // pred_check
        %p293 = pneg %p210
      $region42: #{tpu_custom_call.1} parent=11 // pred_check_branch
        %295 = sbr.rel (%p293) target = $region44
      $region43: #{tpu_custom_call.1} parent=11 // pred_region
        _
      $region44: #{tpu_custom_call.1} parent=11 // pred_fallthru
        _
      // Predicated region
      $region45: #{tpu_custom_call.1} parent=11 // pred_check
        %p296 = pneg %p231
      $region46: #{tpu_custom_call.1} parent=11 // pred_check_branch
        %298 = sbr.rel (%p296) target = $region48
      $region47: #{tpu_custom_call.1} parent=11 // pred_region
        _
      $region48: #{tpu_custom_call.1} parent=11 // pred_fallthru
        _
    $region12: #{tpu_custom_call.1} parent=5 // pred_fallthru
      _
    %p299 = scmp.lt.s32.totalorder %s16, 2
    // Predicated region
    $region49: #{tpu_custom_call.1} parent=5 // pred_check
      %p300 = pneg %p299
    $region50: #{tpu_custom_call.1} parent=5 // pred_check_branch
      %302 = sbr.rel (%p300) target = $region52
    $region51: #{tpu_custom_call.1} parent=5 // pred_region
      // Predicated region
      $region53: #{tpu_custom_call.1} parent=51 // pred_check
        %p303 = pneg %p36
      $region54: #{tpu_custom_call.1} parent=51 // pred_check_branch
        %305 = sbr.rel (%p303) target = $region56
      $region55: #{tpu_custom_call.1} parent=51 // pred_region
        %s306 = smul.u32 4, %s16
        %p307 = scmp.lt.s32.totalorder %s306, 7
        %s308 = scalar_select %p307, %s306, 7
        %s309 = smul.addr %s308, 8
        %s310 = scalar_lea.vmem %s0, %s309
        %s311 = smul.u32 4, %s16
      $region56: #{tpu_custom_call.1} parent=51 // pred_fallthru
        _
    $region52: #{tpu_custom_call.1} parent=5 // pred_fallthru
      _
    %p312 = scmp.le.s32.totalorder 1, %s16
    %p313 = scmp.lt.s32.totalorder %s16, 3
    %p314 = pnand %p312, %p313
    %p315 = pneg %p314
    // Predicated region
    $region57: #{tpu_custom_call.1} parent=5 // pred_check
      _
    $region58: #{tpu_custom_call.1} parent=5 // pred_check_branch
      %317 = sbr.rel (%p314) target = $region60
    $region59: #{tpu_custom_call.1} parent=5 // pred_region
      %s318 = ssub.s32 %s16, 1
      %s319 = smul.u32 4, %s21
      %p320 = scmp.lt.s32.totalorder %s319, 7
      %s321 = scalar_select %p320, %s319, 7
      %s322 = smul.addr %s321, 8
      %s323 = scalar_lea.vmem %s0, %s322
      %p324 = pneg %p42
      %p325 = pneg %p39
      %p326 = pneg %p63
      %p327 = pneg %p60
      %p328 = pneg %p84
      %p329 = pneg %p81
      %p330 = pneg %p105
      %p331 = pneg %p102
      %p332 = pneg %p126
      %p333 = pneg %p123
      %p334 = pneg %p147
      %p335 = pneg %p144
      %p336 = pneg %p168
      %p337 = pneg %p165
      %p338 = pneg %p189
      %p339 = pneg %p186
      %p340 = pneg %p210
      %p341 = pneg %p207
      %p342 = pneg %p231
      %p343 = pneg %p228
      %p344 = pneg %p257
      %p345 = pneg %p254
      %s346 = smul.u32 4, %s21
      %p347 = scmp.lt.s32.totalorder %s346, 7
      %s348 = scalar_select %p347, %s346, 7
      %s349 = smul.addr %s348, 8
      %s350 = scalar_lea.vmem %s10, %s349
      %s351 = smul.u32 4, %s21
      %p352 = scmp.lt.s32.totalorder %s351, 7
      %s353 = scalar_select %p352, %s351, 7
      %s354 = smul.addr %s353, 8
      %s355 = scalar_lea.vmem %s0, %s354
      %s356 = smul.u32 4, %s21
      %s357 = smul.u32 4, %s21
      %p358 = scmp.lt.s32.totalorder %s357, 7
      %s359 = scalar_select %p358, %s357, 7
      %s360 = smul.addr %s359, 8
      %s361 = scalar_lea.vmem %s10, %s360
      %s362 = smul.u32 4, %s21
      %v364 = vld [vmem:[%s355] sm:$0xff]
      %v365 = vld [vmem:[%s355 + $0x8] sm:$0xff]
      %v366 = vld [vmem:[%s355 + $0x10] sm:$0xff]
      %v367 = vld [vmem:[%s355 + $0x18] sm:$0xff]
      %v368 = vpack.c.bf16 %v365, %v364
      %v369 = vpack.c.bf16 %v367, %v366
      %v370 = vld [vmem:[%s1] sm:$0xf]
      %v371 = vld [vmem:[%s1 + $0x4] sm:$0xf]
      %v372 = vld [vmem:[%s1 + $0x8] sm:$0xf]
      %v373 = vld [vmem:[%s1 + $0xc] sm:$0xf]
      %v378 = vunpack.c.l.b16 %v370
      %v379 = vunpack.c.l.b16 %v371
      %v380 = vunpack.c.l.b16 %v372
      %v381 = vunpack.c.l.b16 %v373
      %v382 = vpack.c.b16 %v379, %v378
      %v383 = vpack.c.b16 %v381, %v380
      %vm384 = vcmask 261120
      %v386 = vsel %vm384, %v368, 0
      %v389 = vsel %vm384, %v369, 0
      %v392 = vsel %vm384, %v382, 0
      %v395 = vsel %vm384, %v383, 0
      %397 = vmatprep.subr.bf16.mxu0 0
      %398 = vmatpush1.bf16.xpose.msra.mxu0 %v392
      %399 = vmatprep.subr.bf16.mxu0 0
      %400 = vmatpush1.bf16.xpose.msra.mxu0 %v395
      %401 = vmatprep.subr.bf16.mxu0 0
      %402 = vmatpush1.bf16.xpose.msra.mxu0 0
      %403 = vmatprep.subr.bf16.mxu0 0
      %404 = vmatpush1.bf16.xpose.msra.mxu0 0
      %405 = vmatprep.subr.bf16.mxu0 0
      %406 = vmatpush1.bf16.xpose.msra.mxu0 0
      %407 = vmatprep.subr.bf16.mxu0 0
      %408 = vmatpush1.bf16.xpose.msra.mxu0 0
      %409 = vmatprep.subr.bf16.mxu0 0
      %410 = vmatpush1.bf16.xpose.msra.mxu0 0
      %411 = vmatprep.subr.bf16.mxu0 0
      %412 = vmatpush1.bf16.xpose.msra.mxu0 0
      %413 = vmatprep.subr.bf16.mxu0 0
      %414 = vmatpush1.bf16.xpose.msra.mxu0 0
      %415 = vmatprep.subr.bf16.mxu0 0
      %416 = vmatpush1.bf16.xpose.msra.mxu0 0
      %417 = vmatprep.subr.bf16.mxu0 0
      %418 = vmatpush1.bf16.xpose.msra.mxu0 0
      %419 = vmatprep.subr.bf16.mxu0 0
      %420 = vmatpush1.bf16.xpose.msra.mxu0 0
      %421 = vmatprep.subr.bf16.mxu0 0
      %422 = vmatpush1.bf16.xpose.msra.mxu0 0
      %423 = vmatprep.subr.bf16.mxu0 0
      %424 = vmatpush1.bf16.xpose.msra.mxu0 0
      %425 = vmatprep.subr.bf16.mxu0 0
      %426 = vmatpush1.bf16.xpose.msra.mxu0 0
      %427 = vmatprep.subr.bf16.mxu0 0
      %428 = vmatpush1.bf16.xpose.msra.mxu0 0
      %429 = vmatprep.mubr.bf16.mxu0 0
      %430 = vmatmul.mubr.bf16.gmra.mrb[0].mxu0 %v386
      %v431 = vpop.f32.mrb[0].mxu0
      %v432 = vadd.f32 0.0, %v431
      %v433 = vpop.f32.mrb[0].mxu0
      %v434 = vpop.f32.mrb[0].mxu0
      %v435 = vadd.f32 0.0, %v434
      %v436 = vpop.f32.mrb[0].mxu0
      %437 = vmatprep.mubr.bf16.mxu0 0
      %438 = vmatmul.mubr.bf16.gmra.mrb[0].mxu0 %v389
      %v439 = vpop.f32.mrb[0].mxu0
      %v440 = vadd.f32 0.0, %v439
      %v441 = vpop.f32.mrb[0].mxu0
      %v442 = vpop.f32.mrb[0].mxu0
      %v443 = vadd.f32 0.0, %v442
      %v444 = vpop.f32.mrb[0].mxu0
      %445 = vdwg.mxu0
      %v446 = vsel %vm384, %v432, 0.0
      %447 = vadd.xlane.f32.xlu0 %v446
      %v448 = vpop.xlane.xlu0 %447
      %v449 = vsel %vm384, %v435, 0.0
      %450 = vadd.xlane.f32.xlu0 %v449
      %v451 = vpop.xlane.xlu0 %450
      %v452 = vsel %vm384, %v440, 0.0
      %453 = vadd.xlane.f32.xlu0 %v452
      %v454 = vpop.xlane.xlu0 %453
      %v455 = vsel %vm384, %v443, 0.0
      %456 = vadd.xlane.f32.xlu0 %v455
      %v457 = vpop.xlane.xlu0 %456
      %v458 = vmul.f32 %v432, %v432
      %v459 = vmul.f32 %v435, %v435
      %v460 = vmul.f32 %v440, %v440
      %v461 = vmul.f32 %v443, %v443
      %v462 = vsel %vm384, %v458, 0.0
      %463 = vadd.xlane.f32.xlu0 %v462
      %v464 = vpop.xlane.xlu0 %463
      %v465 = vsel %vm384, %v459, 0.0
      %466 = vadd.xlane.f32.xlu0 %v465
      %v467 = vpop.xlane.xlu0 %466
      %v468 = vsel %vm384, %v460, 0.0
      %469 = vadd.xlane.f32.xlu0 %v468
      %v470 = vpop.xlane.xlu0 %469
      %v471 = vsel %vm384, %v461, 0.0
      %472 = vadd.xlane.f32.xlu0 %v471
      %v473 = vpop.xlane.xlu0 %472
      %v474 = vmul.f32 %v448, 0.03125
      %v475 = vmul.f32 %v451, 0.03125
      %v476 = vmul.f32 %v454, 0.03125
      %v477 = vmul.f32 %v457, 0.03125
      %v478 = vmul.f32 %v464, 0.03125
      %v479 = vmul.f32 %v467, 0.03125
      %v480 = vmul.f32 %v470, 0.03125
      %v481 = vmul.f32 %v473, 0.03125
      %v482 = vmul.f32 %v474, %v474
      %v483 = vmul.f32 %v475, %v475
      %v484 = vmul.f32 %v476, %v476
      %v485 = vmul.f32 %v477, %v477
      %v486 = vsub.f32 %v478, %v482
      %v487 = vsub.f32 %v479, %v483
      %v488 = vsub.f32 %v480, %v484
      %v489 = vsub.f32 %v481, %v485
      %v490 = vmax.f32 %v486, 0.0
      %v491 = vmax.f32 %v487, 0.0
      %v492 = vmax.f32 %v488, 0.0
      %v493 = vmax.f32 %v489, 0.0
      %v494 = vsub.f32 %v432, %v474
      %v495 = vsub.f32 %v435, %v475
      %v496 = vsub.f32 %v440, %v476
      %v497 = vsub.f32 %v443, %v477
      %v498 = vadd.f32 %v490, 1e-05
      %v499 = vadd.f32 %v491, 1e-05
      %v500 = vadd.f32 %v492, 1e-05
      %v501 = vadd.f32 %v493, 1e-05
      %v502 = vrsqrt.pop %v498
      %v503 = vrsqrt.pop %v499
      %v504 = vrsqrt.pop %v500
      %v505 = vrsqrt.pop %v501
      %v506 = vmul.f32 %v494, %v502
      %v507 = vmul.f32 %v495, %v503
      %v508 = vmul.f32 %v496, %v504
      %v509 = vmul.f32 %v497, %v505
      %v510 = vld [vmem:[%s2] sm:$0x1]
      %v512 = vlaneseq
      %v513 = vshrl.u32 %v512, 7
      %v514 = vsub.s32 0, %v513
      %v515 = vrot.slane %v510, %v514
      %v517 = vmul.f32 %v506, %v515
      %v518 = vmul.f32 %v507, %v515
      %v519 = vmul.f32 %v508, %v515
      %v520 = vmul.f32 %v509, %v515
      %v521 = vld [vmem:[%s3] sm:$0x1]
      %v523 = vlaneseq
      %v524 = vshrl.u32 %v523, 7
      %v525 = vsub.s32 0, %v524
      %v526 = vrot.slane %v521, %v525
      %v528 = vadd.f32 %v517, %v526
      %v529 = vadd.f32 %v518, %v526
      %v530 = vadd.f32 %v519, %v526
      %v531 = vadd.f32 %v520, %v526
      %v532 = vtanh.pop %v528
      %v533 = vtanh.pop %v529
      %v534 = vtanh.pop %v530
      %v535 = vtanh.pop %v531
      %v536 = vadd.f32 %v532, %v364
      %v537 = vadd.f32 %v533, %v365
      %v538 = vadd.f32 %v534, %v366
      %v539 = vadd.f32 %v535, %v367
      %v540 = vpack.c.bf16 %v537, %v536
      %v541 = vpack.c.bf16 %v539, %v538
      %v542 = vld [vmem:[%s4] sm:$0xf]
      %v543 = vld [vmem:[%s4 + $0x4] sm:$0xf]
      %v544 = vld [vmem:[%s4 + $0x8] sm:$0xf]
      %v545 = vld [vmem:[%s4 + $0xc] sm:$0xf]
      %v550 = vunpack.c.l.b16 %v542
      %v551 = vunpack.c.l.b16 %v543
      %v552 = vunpack.c.l.b16 %v544
      %v553 = vunpack.c.l.b16 %v545
      %v554 = vpack.c.b16 %v551, %v550
      %v555 = vpack.c.b16 %v553, %v552
      %v557 = vsel %vm384, %v540, 0
      %v560 = vsel %vm384, %v541, 0
      %v563 = vsel %vm384, %v554, 0
      %v566 = vsel %vm384, %v555, 0
      %568 = vmatprep.subr.bf16.mxu0 0
      %569 = vmatpush1.bf16.xpose.msra.mxu0 %v563
      %570 = vmatprep.subr.bf16.mxu0 0
      %571 = vmatpush1.bf16.xpose.msra.mxu0 %v566
      %572 = vmatprep.subr.bf16.mxu0 0
      %573 = vmatpush1.bf16.xpose.msra.mxu0 0
      %574 = vmatprep.subr.bf16.mxu0 0
      %575 = vmatpush1.bf16.xpose.msra.mxu0 0
      %576 = vmatprep.subr.bf16.mxu0 0
      %577 = vmatpush1.bf16.xpose.msra.mxu0 0
      %578 = vmatprep.subr.bf16.mxu0 0
      %579 = vmatpush1.bf16.xpose.msra.mxu0 0
      %580 = vmatprep.subr.bf16.mxu0 0
      %581 = vmatpush1.bf16.xpose.msra.mxu0 0
      %582 = vmatprep.subr.bf16.mxu0 0
      %583 = vmatpush1.bf16.xpose.msra.mxu0 0
      %584 = vmatprep.subr.bf16.mxu0 0
      %585 = vmatpush1.bf16.xpose.msra.mxu0 0
      %586 = vmatprep.subr.bf16.mxu0 0
      %587 = vmatpush1.bf16.xpose.msra.mxu0 0
      %588 = vmatprep.subr.bf16.mxu0 0
      %589 = vmatpush1.bf16.xpose.msra.mxu0 0
      %590 = vmatprep.subr.bf16.mxu0 0
      %591 = vmatpush1.bf16.xpose.msra.mxu0 0
      %592 = vmatprep.subr.bf16.mxu0 0
      %593 = vmatpush1.bf16.xpose.msra.mxu0 0
      %594 = vmatprep.subr.bf16.mxu0 0
      %595 = vmatpush1.bf16.xpose.msra.mxu0 0
      %596 = vmatprep.subr.bf16.mxu0 0
      %597 = vmatpush1.bf16.xpose.msra.mxu0 0
      %598 = vmatprep.subr.bf16.mxu0 0
      %599 = vmatpush1.bf16.xpose.msra.mxu0 0
      %600 = vmatprep.mubr.bf16.mxu0 0
      %601 = vmatmul.mubr.bf16.gmra.mrb[0].mxu0 %v557
      %v602 = vpop.f32.mrb[0].mxu0
      %v603 = vadd.f32 0.0, %v602
      %v604 = vpop.f32.mrb[0].mxu0
      %v605 = vpop.f32.mrb[0].mxu0
      %v606 = vadd.f32 0.0, %v605
      %v607 = vpop.f32.mrb[0].mxu0
      %608 = vmatprep.mubr.bf16.mxu0 0
      %609 = vmatmul.mubr.bf16.gmra.mrb[0].mxu0 %v560
      %v610 = vpop.f32.mrb[0].mxu0
      %v611 = vadd.f32 0.0, %v610
      %v612 = vpop.f32.mrb[0].mxu0
      %v613 = vpop.f32.mrb[0].mxu0
      %v614 = vadd.f32 0.0, %v613
      %v615 = vpop.f32.mrb[0].mxu0
      %616 = vdwg.mxu0
      %v617 = vsel %vm384, %v603, 0.0
      %618 = vadd.xlane.f32.xlu0 %v617
      %v619 = vpop.xlane.xlu0 %618
      %v620 = vsel %vm384, %v606, 0.0
      %621 = vadd.xlane.f32.xlu0 %v620
      %v622 = vpop.xlane.xlu0 %621
      %v623 = vsel %vm384, %v611, 0.0
      %624 = vadd.xlane.f32.xlu0 %v623
      %v625 = vpop.xlane.xlu0 %624
      %v626 = vsel %vm384, %v614, 0.0
      %627 = vadd.xlane.f32.xlu0 %v626
      %v628 = vpop.xlane.xlu0 %627
      %v629 = vmul.f32 %v603, %v603
      %v630 = vmul.f32 %v606, %v606
      %v631 = vmul.f32 %v611, %v611
      %v632 = vmul.f32 %v614, %v614
      %v633 = vsel %vm384, %v629, 0.0
      %634 = vadd.xlane.f32.xlu0 %v633
      %v635 = vpop.xlane.xlu0 %634
      %v636 = vsel %vm384, %v630, 0.0
      %637 = vadd.xlane.f32.xlu0 %v636
      %v638 = vpop.xlane.xlu0 %637
      %v639 = vsel %vm384, %v631, 0.0
      %640 = vadd.xlane.f32.xlu0 %v639
      %v641 = vpop.xlane.xlu0 %640
      %v642 = vsel %vm384, %v632, 0.0
      %643 = vadd.xlane.f32.xlu0 %v642
      %v644 = vpop.xlane.xlu0 %643
      %v645 = vmul.f32 %v619, 0.03125
      %v646 = vmul.f32 %v622, 0.03125
      %v647 = vmul.f32 %v625, 0.03125
      %v648 = vmul.f32 %v628, 0.03125
      %v649 = vmul.f32 %v635, 0.03125
      %v650 = vmul.f32 %v638, 0.03125
      %v651 = vmul.f32 %v641, 0.03125
      %v652 = vmul.f32 %v644, 0.03125
      %v653 = vmul.f32 %v645, %v645
      %v654 = vmul.f32 %v646, %v646
      %v655 = vmul.f32 %v647, %v647
      %v656 = vmul.f32 %v648, %v648
      %v657 = vsub.f32 %v649, %v653
      %v658 = vsub.f32 %v650, %v654
      %v659 = vsub.f32 %v651, %v655
      %v660 = vsub.f32 %v652, %v656
      %v661 = vmax.f32 %v657, 0.0
      %v662 = vmax.f32 %v658, 0.0
      %v663 = vmax.f32 %v659, 0.0
      %v664 = vmax.f32 %v660, 0.0
      %v665 = vsub.f32 %v603, %v645
      %v666 = vsub.f32 %v606, %v646
      %v667 = vsub.f32 %v611, %v647
      %v668 = vsub.f32 %v614, %v648
      %v669 = vadd.f32 %v661, 1e-05
      %v670 = vadd.f32 %v662, 1e-05
      %v671 = vadd.f32 %v663, 1e-05
      %v672 = vadd.f32 %v664, 1e-05
      %v673 = vrsqrt.pop %v669
      %v674 = vrsqrt.pop %v670
      %v675 = vrsqrt.pop %v671
      %v676 = vrsqrt.pop %v672
      %v677 = vmul.f32 %v665, %v673
      %v678 = vmul.f32 %v666, %v674
      %v679 = vmul.f32 %v667, %v675
      %v680 = vmul.f32 %v668, %v676
      %v681 = vld [vmem:[%s5] sm:$0x1]
      %v683 = vlaneseq
      %v684 = vshrl.u32 %v683, 7
      %v685 = vsub.s32 0, %v684
      %v686 = vrot.slane %v681, %v685
      %v688 = vmul.f32 %v677, %v686
      %v689 = vmul.f32 %v678, %v686
      %v690 = vmul.f32 %v679, %v686
      %v691 = vmul.f32 %v680, %v686
      %v692 = vld [vmem:[%s6] sm:$0x1]
      %v694 = vlaneseq
      %v695 = vshrl.u32 %v694, 7
      %v696 = vsub.s32 0, %v695
      %v697 = vrot.slane %v692, %v696
      %v699 = vadd.f32 %v688, %v697
      %v700 = vadd.f32 %v689, %v697
      %v701 = vadd.f32 %v690, %v697
      %v702 = vadd.f32 %v691, %v697
      %v703 = vtanh.pop %v699
      %v704 = vtanh.pop %v700
      %v705 = vtanh.pop %v701
      %v706 = vtanh.pop %v702
      %v707 = vadd.f32 %v703, %v536
      %v708 = vadd.f32 %v704, %v537
      %v709 = vadd.f32 %v705, %v538
      %v710 = vadd.f32 %v706, %v539
      %v711 = vpack.c.bf16 %v708, %v707
      %v712 = vpack.c.bf16 %v710, %v709
      %v713 = vld [vmem:[%s7] sm:$0xf]
      %v714 = vld [vmem:[%s7 + $0x4] sm:$0xf]
      %v717 = vunpack.c.l.b16 %v713
      %v718 = vunpack.c.l.b16 %v714
      %v719 = vpack.c.b16 %v718, %v717
      %v721 = vsel %vm384, %v711, 0
      %v724 = vsel %vm384, %v712, 0
      %v727 = vsel %vm384, %v719, 0
      %729 = vmatprep.subr.bf16.mxu0 0
      %730 = vmatpush1.bf16.xpose.msra.mxu0 %v727
      %731 = vmatprep.subr.bf16.mxu0 0
      %732 = vmatpush1.bf16.xpose.msra.mxu0 0
      %733 = vmatprep.subr.bf16.mxu0 0
      %734 = vmatpush1.bf16.xpose.msra.mxu0 0
      %735 = vmatprep.subr.bf16.mxu0 0
      %736 = vmatpush1.bf16.xpose.msra.mxu0 0
      %737 = vmatprep.subr.bf16.mxu0 0
      %738 = vmatpush1.bf16.xpose.msra.mxu0 0
      %739 = vmatprep.subr.bf16.mxu0 0
      %740 = vmatpush1.bf16.xpose.msra.mxu0 0
      %741 = vmatprep.subr.bf16.mxu0 0
      %742 = vmatpush1.bf16.xpose.msra.mxu0 0
      %743 = vmatprep.subr.bf16.mxu0 0
      %744 = vmatpush1.bf16.xpose.msra.mxu0 0
      %745 = vmatprep.subr.bf16.mxu0 0
      %746 = vmatpush1.bf16.xpose.msra.mxu0 0
      %747 = vmatprep.subr.bf16.mxu0 0
      %748 = vmatpush1.bf16.xpose.msra.mxu0 0
      %749 = vmatprep.subr.bf16.mxu0 0
      %750 = vmatpush1.bf16.xpose.msra.mxu0 0
      %751 = vmatprep.subr.bf16.mxu0 0
      %752 = vmatpush1.bf16.xpose.msra.mxu0 0
      %753 = vmatprep.subr.bf16.mxu0 0
      %754 = vmatpush1.bf16.xpose.msra.mxu0 0
      %755 = vmatprep.subr.bf16.mxu0 0
      %756 = vmatpush1.bf16.xpose.msra.mxu0 0
      %757 = vmatprep.subr.bf16.mxu0 0
      %758 = vmatpush1.bf16.xpose.msra.mxu0 0
      %759 = vmatprep.subr.bf16.mxu0 0
      %760 = vmatpush1.bf16.xpose.msra.mxu0 0
      %761 = vmatprep.mubr.bf16.mxu0 0
      %762 = vmatmul.mubr.bf16.gmra.mrb[0].mxu0 %v721
      %v763 = vpop.f32.mrb[0].mxu0
      %v764 = vadd.f32 0.0, %v763
      %v765 = vpop.f32.mrb[0].mxu0
      %v766 = vpop.f32.mrb[0].mxu0
      %v767 = vadd.f32 0.0, %v766
      %v768 = vpop.f32.mrb[0].mxu0
      %769 = vmatprep.mubr.bf16.mxu0 0
      %770 = vmatmul.mubr.bf16.gmra.mrb[0].mxu0 %v724
      %v771 = vpop.f32.mrb[0].mxu0
      %v772 = vadd.f32 0.0, %v771
      %v773 = vpop.f32.mrb[0].mxu0
      %v774 = vpop.f32.mrb[0].mxu0
      %v775 = vadd.f32 0.0, %v774
      %v776 = vpop.f32.mrb[0].mxu0
      %777 = vdwg.mxu0
      %vm778 = vcmask 130048
      %v779 = vsel %vm778, %v764, 0.0
      %780 = vadd.xlane.f32.xlu0 %v779
      %v781 = vpop.xlane.xlu0 %780
      %v782 = vsel %vm778, %v767, 0.0
      %783 = vadd.xlane.f32.xlu0 %v782
      %v784 = vpop.xlane.xlu0 %783
      %v785 = vsel %vm778, %v772, 0.0
      %786 = vadd.xlane.f32.xlu0 %v785
      %v787 = vpop.xlane.xlu0 %786
      %v788 = vsel %vm778, %v775, 0.0
      %789 = vadd.xlane.f32.xlu0 %v788
      %v790 = vpop.xlane.xlu0 %789
      %v791 = vmul.f32 %v764, %v764
      %v792 = vmul.f32 %v767, %v767
      %v793 = vmul.f32 %v772, %v772
      %v794 = vmul.f32 %v775, %v775
      %v795 = vsel %vm778, %v791, 0.0
      %796 = vadd.xlane.f32.xlu0 %v795
      %v797 = vpop.xlane.xlu0 %796
      %v798 = vsel %vm778, %v792, 0.0
      %799 = vadd.xlane.f32.xlu0 %v798
      %v800 = vpop.xlane.xlu0 %799
      %v801 = vsel %vm778, %v793, 0.0
      %802 = vadd.xlane.f32.xlu0 %v801
      %v803 = vpop.xlane.xlu0 %802
      %v804 = vsel %vm778, %v794, 0.0
      %805 = vadd.xlane.f32.xlu0 %v804
      %v806 = vpop.xlane.xlu0 %805
      %v807 = vmul.f32 %v781, 0.0625
      %v808 = vmul.f32 %v784, 0.0625
      %v809 = vmul.f32 %v787, 0.0625
      %v810 = vmul.f32 %v790, 0.0625
      %v811 = vmul.f32 %v797, 0.0625
      %v812 = vmul.f32 %v800, 0.0625
      %v813 = vmul.f32 %v803, 0.0625
      %v814 = vmul.f32 %v806, 0.0625
      %v815 = vmul.f32 %v807, %v807
      %v816 = vmul.f32 %v808, %v808
      %v817 = vmul.f32 %v809, %v809
      %v818 = vmul.f32 %v810, %v810
      %v819 = vsub.f32 %v811, %v815
      %v820 = vsub.f32 %v812, %v816
      %v821 = vsub.f32 %v813, %v817
      %v822 = vsub.f32 %v814, %v818
      %v823 = vmax.f32 %v819, 0.0
      %v824 = vmax.f32 %v820, 0.0
      %v825 = vmax.f32 %v821, 0.0
      %v826 = vmax.f32 %v822, 0.0
      %v827 = vsub.f32 %v764, %v807
      %v828 = vsub.f32 %v767, %v808
      %v829 = vsub.f32 %v772, %v809
      %v830 = vsub.f32 %v775, %v810
      %v831 = vadd.f32 %v823, 1e-05
      %v832 = vadd.f32 %v824, 1e-05
      %v833 = vadd.f32 %v825, 1e-05
      %v834 = vadd.f32 %v826, 1e-05
      %v835 = vrsqrt.pop %v831
      %v836 = vrsqrt.pop %v832
      %v837 = vrsqrt.pop %v833
      %v838 = vrsqrt.pop %v834
      %v839 = vmul.f32 %v827, %v835
      %v840 = vmul.f32 %v828, %v836
      %v841 = vmul.f32 %v829, %v837
      %v842 = vmul.f32 %v830, %v838
      %v843 = vld [vmem:[%s8] sm:$0x1]
      %v845 = vlaneseq
      %v846 = vshrl.u32 %v845, 7
      %v847 = vsub.s32 0, %v846
      %v848 = vrot.slane %v843, %v847
      %v850 = vmul.f32 %v839, %v848
      %v851 = vmul.f32 %v840, %v848
      %v852 = vmul.f32 %v841, %v848
      %v853 = vmul.f32 %v842, %v848
      %v854 = vld [vmem:[%s9] sm:$0x1]
      %v856 = vlaneseq
      %v857 = vshrl.u32 %v856, 7
      %v858 = vsub.s32 0, %v857
      %v859 = vrot.slane %v854, %v858
      %v861 = vadd.f32 %v850, %v859
      %v862 = vadd.f32 %v851, %v859
      %v863 = vadd.f32 %v852, %v859
      %v864 = vadd.f32 %v853, %v859
      %v865 = vtanh.pop %v861
      %v866 = vtanh.pop %v862
      %v867 = vtanh.pop %v863
      %v868 = vtanh.pop %v864
      %869 = vst.msk [vmem:[%s361] sm:$0xff] %vm778, %v865
      %870 = vst.msk [vmem:[%s361 + $0x8] sm:$0xff] %vm778, %v866
      %871 = vst.msk [vmem:[%s361 + $0x10] sm:$0xff] %vm778, %v867
      %872 = vst.msk [vmem:[%s361 + $0x18] sm:$0xff] %vm778, %v868
      %s873 = smul.u32 4, %s21
      %p874 = scmp.lt.s32.totalorder %s873, 7
      %s875 = scalar_select %p874, %s873, 7
      %s876 = smul.addr %s875, 8
      %s877 = scalar_lea.vmem %s10, %s876
      // Predicated region
      $region61: #{tpu_custom_call.1} parent=59 // pred_check
        %p878 = pneg %p254
      $region62: #{tpu_custom_call.1} parent=59 // pred_check_branch
        %880 = sbr.rel (%p878) target = $region64
      $region63: #{tpu_custom_call.1} parent=59 // pred_region
        %s881 = smul.u32 4, %s21
      $region64: #{tpu_custom_call.1} parent=59 // pred_fallthru
        _
    $region60: #{tpu_custom_call.1} parent=5 // pred_fallthru
      _
    %p882 = scmp.le.s32.totalorder 2, %s16
    // Predicated region
    $region65: #{tpu_custom_call.1} parent=5 // pred_check
      %p883 = pneg %p882
    $region66: #{tpu_custom_call.1} parent=5 // pred_check_branch
      %885 = sbr.rel (%p883) target = $region68
    $region67: #{tpu_custom_call.1} parent=5 // pred_region
      %s886 = ssub.s32 %s16, 2
      // Predicated region
      $region69: #{tpu_custom_call.1} parent=67 // pred_check
        %p887 = pneg %p260
      $region70: #{tpu_custom_call.1} parent=67 // pred_check_branch
        %889 = sbr.rel (%p887) target = $region72
      $region71: #{tpu_custom_call.1} parent=67 // pred_region
        %s890 = smul.u32 4, %s22
        %p891 = scmp.lt.s32.totalorder %s890, 7
        %s892 = scalar_select %p891, %s890, 7
        %s893 = smul.addr %s892, 8
        %s894 = scalar_lea.vmem %s10, %s893
      $region72: #{tpu_custom_call.1} parent=67 // pred_fallthru
        _
    $region68: #{tpu_custom_call.1} parent=5 // pred_fallthru
      _
  $region6: #{tpu_custom_call.1} parent=0 // loop_footer
    %s20 = sadd.s32 1, %s16
  $region7: #{tpu_custom_call.1} parent=0 // loop_footer_branch
    %15 = sbr.rel target = $region3
  $region8: #{tpu_custom_call.1} parent=0 // loop_exit
    _

</llo_original>
